<compile_context>
chip_gen: v7x
topology: tpu7x:2x2x1
jax: 0.10.0
libtpu: 0.0.40
codegen_flags: <defaults>
</compile_context>

<pallas_src>
import math

import jax
import jax.numpy as jnp
import numpy as np
from jax.experimental import pallas as pl
from jax.experimental.pallas import tpu as pltpu


def _round_up(x: int, m: int) -> int:
    return ((x + m - 1) // m) * m


def _cdiv(a: int, b: int) -> int:
    return -(-a // b)


def _fixed_table_np(c_in: int, d_model: int) -> np.ndarray:
    """Deterministic sinusoidal table, identical to FixedEmbedding.__init__."""
    pos = np.arange(c_in, dtype=np.float32)[:, None]                        # [c_in, 1]
    div = np.exp(np.arange(0, d_model, 2, dtype=np.float32)
                 * -(math.log(10000.0) / d_model))                          # [d_model/2]
    w = np.zeros((c_in, d_model), dtype=np.float32)
    w[:, 0::2] = np.sin(pos * div)
    w[:, 1::2] = np.cos(pos * div)
    return w


def _make_kernel(group_ranges, num_groups):
    """group_ranges: static tuple of (f0, f1) column ranges into the
    offset-index matrix, one range per fused table ref."""

    def kernel(idx_ref, *tbl_refs_and_out):
        tbl_refs = tbl_refs_and_out[:num_groups]
        out_ref = tbl_refs_and_out[num_groups]
        idx = idx_ref[...]                                    # [tile_b, F] int32
        tile_b = out_ref.shape[0]

        for g, ((f0, f1), tbl_ref) in enumerate(zip(group_ranges, tbl_refs)):
            k_g = tbl_ref.shape[0]
            iota = jax.lax.broadcasted_iota(jnp.int32, (tile_b, k_g), 1)
            # Combined one-hot for all features of this group.  The fused-table
            # row offsets were pre-added in the wrapper, so each feature's hot
            # range is disjoint and summing the compares equals a logical OR.
            # (Out-of-range indices contribute an all-zero row.)
            onehot = (idx[:, f0:f0 + 1] == iota).astype(tbl_ref.dtype)
            for f in range(f0 + 1, f1):
                onehot = onehot + (idx[:, f:f + 1] == iota).astype(tbl_ref.dtype)
            part = jnp.dot(onehot, tbl_ref[...],
                           preferred_element_type=jnp.float32)
            if g == 0:
                out_ref[...] = part.astype(out_ref.dtype)      # no acc temporary
            else:
                out_ref[...] += part.astype(out_ref.dtype)

    return kernel


class TimeFeatureEncoding:
    """Pallas port of the PyTorch TimeFeatureEncoding (embed_type='fixed')."""

    MINUTE_IN_HOUR = 60
    HOUR_IN_DAY = 24
    DAY_IN_WEEK = 7
    DAY_IN_MONTH = 31
    MONTH_IN_YEAR = 12

    # Conservative in-kernel VMEM estimate budget plus the scoped-VMEM limit we
    # request (32 MiB is <= the default scoped limit on v6e/v7x and well under
    # physical VMEM on every generation, so this sizing is portable).
    _VMEM_BUDGET = 20 * 1024 * 1024
    _VMEM_LIMIT = 32 * 1024 * 1024

    def __init__(self, d_model: int, embed_type: str = "fixed", freq: str = "h",
                 table_dtype=jnp.float32, max_tile_rows: int | None = None,
                 max_group_k: int = 128):
        assert embed_type == "fixed", "only fixed (sinusoidal) tables are built in-script"
        assert d_model % 2 == 0, "sin/cos interleave requires even d_model"
        self.d_model = d_model
        self.d_pad = _round_up(d_model, 128)          # lane-dense output width
        # TODO(synk): if small d_model (<128) is a hot production case, fold
        # 128//d_model timesteps per 128-lane output row instead of lane-padding.
        self.freq = freq
        self.max_tile_rows = max_tile_rows

        # (feature column in x_timeF, table size) in the torch forward order:
        #   hour -> col 3, weekday -> col 2, day -> col 1, month -> col 0,
        #   minute -> col 4 (only if freq == 'm').
        feats = [(3, self.HOUR_IN_DAY), (2, self.DAY_IN_WEEK),
                 (1, self.DAY_IN_MONTH), (0, self.MONTH_IN_YEAR)]
        if freq == "m":
            feats.append((4, self.MINUTE_IN_HOUR))

        # Greedily group features so each fused table has <= max_group_k (=128)
        # rows: one MXU contraction pass per group on every generation.
        groups, cur, cur_k = [], [], 0
        for col, c_in in feats:
            if cur and cur_k + c_in > max_group_k:
                groups.append(cur)
                cur, cur_k = [], 0
            cur.append((col, c_in))
            cur_k += c_in
        if cur:
            groups.append(cur)

        self._cols = []            # feature column per one-hot index column
        self._offsets = []         # row offset of the feature inside its fused table
        self._group_ranges = []    # (f0, f1) slice of the above, per group
        self._tables = []          # fused [K_g, d_pad] tables
        self._ref_tables = []      # unfused (col, [c_in, d_model]) for the JAX reference
        f = 0
        for grp in groups:
            k_g = sum(c for _, c in grp)
            tbl = np.zeros((k_g, self.d_pad), np.float32)
            off, f0 = 0, f
            for col, c_in in grp:
                t = _fixed_table_np(c_in, d_model)
                tbl[off:off + c_in, :d_model] = t
                self._ref_tables.append((col, jnp.asarray(t)))
                self._cols.append(col)
                self._offsets.append(off)
                off += c_in
                f += 1
            self._group_ranges.append((f0, f))
            self._tables.append(jnp.asarray(tbl, dtype=table_dtype))
        self._group_ranges = tuple(self._group_ranges)
        self._k_total = sum(int(t.shape[0]) for t in self._tables)

        self._budget_tile_rows = self._pick_budget_rows()
        self._kernel = _make_kernel(self._group_ranges, len(self._tables))

    # ---------------- tiling ----------------

    def _pick_budget_rows(self) -> int:
        """Largest tile row count (multiple of 128) whose VMEM estimate fits the budget."""
        d_out = self.d_pad * 4
        # Resident fused tables (the pipeline still allocates 2 buffers even
        # though the constant index_map means they are fetched only once).
        table_bytes = sum(2 * int(t.shape[0]) * self.d_pad * t.dtype.itemsize
                          for t in self._tables)
        bytes_per_row = (
            2 * d_out                  # double-buffered output block
            + 2 * 128 * 4              # double-buffered idx block (lanes padded 5 -> 128)
            + 128 * 4                  # combined one-hot (one group live at a time)
            + (d_out if len(self._tables) > 1 else 0)  # partial-dot temp for out_ref +=
            + 512)                     # misc vector temporaries / headroom
        rows = (self._VMEM_BUDGET - table_bytes) // bytes_per_row
        rows = max(128, (rows // 128) * 128)
        return min(rows, 8192)

    def _choose_tiling(self, nt: int):
        cap = self._budget_tile_rows
        if self.max_tile_rows is not None:
            cap = max(128, (self.max_tile_rows // 128) * 128)
        if nt <= 1024:
            # Tiny input: one exact block (block dims equal the full array dims,
            # so no (8,128) divisibility requirement and no ragged handling).
            return nt, 1
        g = _cdiv(nt, cap)
        if g < 8 and g % 2 == 1:
            # Round short grids up to an even number of ~equal tiles so the two
            # TensorCores of v7x split the "parallel" row axis evenly.
            g += 1
        tile_b = min(cap, _round_up(_cdiv(nt, g), 128))
        return tile_b, _cdiv(nt, tile_b)

    # ---------------- forward ----------------

    def __call__(self, x_timeF: jnp.ndarray) -> jnp.ndarray:
        N, T, F = x_timeF.shape
        assert F == 5, "x_timeF must be [N, T, 5]"
        nt = N * T
        idx = x_timeF.astype(jnp.int32).reshape(nt, 5)

        # Select the used feature columns and pre-add the fused-table row
        # offsets (tiny XLA elementwise work on an [nt, F_used] int32 array).
        idx_off = jnp.stack(
            [idx[:, c] + o for c, o in zip(self._cols, self._offsets)], axis=1)
        f_used = idx_off.shape[1]

        tile_b, n_tiles = self._choose_tiling(nt)

        table_bytes = sum(int(t.size) * t.dtype.itemsize for t in self._tables)
        cost = pl.CostEstimate(
            flops=2 * nt * self._k_total * self.d_pad,
            transcendentals=0,
            bytes_accessed=nt * self.d_pad * 4 + nt * f_used * 4 + table_bytes)

        in_specs = [pl.BlockSpec((tile_b, f_used), lambda i: (i, 0))]
        for tbl in self._tables:
            # Full-array block with constant index map -> table stays resident
            # in VMEM across all grid iterations.
            in_specs.append(pl.BlockSpec(tbl.shape, lambda i: (0, 0)))

        out2d = pl.pallas_call(
            self._kernel,
            out_shape=jax.ShapeDtypeStruct((nt, self.d_pad), jnp.float32),
            grid=(n_tiles,),
            in_specs=in_specs,
            out_specs=pl.BlockSpec((tile_b, self.d_pad), lambda i: (i, 0)),
            compiler_params=pltpu.CompilerParams(
                dimension_semantics=("parallel",),
                vmem_limit_bytes=self._VMEM_LIMIT),
            cost_estimate=cost,
        )(idx_off, *self._tables)

        if self.d_pad != self.d_model:
            # Only taken when d_model % 128 != 0; in the lane-dense production
            # case the kernel's stores are the only pass over the output.
            out2d = out2d[:, :self.d_model]
        return out2d.reshape(N, T, self.d_model)

    # Pure-JAX reference (mirrors the PyTorch forward) for verification.
    def reference(self, x_timeF: jnp.ndarray) -> jnp.ndarray:
        idx = x_timeF.astype(jnp.int32)
        out = jnp.zeros(idx.shape[:2] + (self.d_model,), jnp.float32)
        for col, tbl in self._ref_tables:
            out = out + jnp.take(tbl, idx[:, :, col], axis=0)
        return out


def _random_time_features(key, N, T):
    k_month, k_day, k_wday, k_hour, k_min = jax.random.split(key, 5)
    # Feature order: [month, day, weekday, hour, minute], all 0-based.
    month = jax.random.randint(k_month, (N, T), 0, 12, dtype=jnp.int32)
    day = jax.random.randint(k_day, (N, T), 0, 31, dtype=jnp.int32)
    weekday = jax.random.randint(k_wday, (N, T), 0, 7, dtype=jnp.int32)
    hour = jax.random.randint(k_hour, (N, T), 0, 24, dtype=jnp.int32)
    minute = jax.random.randint(k_min, (N, T), 0, 60, dtype=jnp.int32)
    return jnp.stack([month, day, weekday, hour, minute], axis=-1)          # [N, T, 5]


if __name__ == "__main__":
    key = jax.random.PRNGKey(0)
    k_small, k_big = jax.random.split(key)

    ok = True

    # Small case: d_model < 128 exercises the lane-padding path and nt <= 1024
    # exercises the exact single-block path, for both freqs.
    x_small = _random_time_features(k_small, 2, 8)
    for freq in ("h", "m"):
        enc = TimeFeatureEncoding(32, embed_type="fixed", freq=freq)
        out = jax.block_until_ready(enc(x_small))
        ref = enc.reference(x_small)
        if out.shape != (2, 8, 32) or not bool(
            jnp.allclose(out, ref, atol=1e-5, rtol=1e-5)
        ):
            ok = False

    # Larger case: N*T = 2100, d_model = 128 (lane-dense, no post-kernel copy),
    # two fused-table groups.  Run once with the VMEM-budgeted tiling (two even
    # tiles, ragged second block) and once with max_tile_rows=512 to force a
    # longer multi-tile grid with a ragged last block.
    x_big = _random_time_features(k_big, 3, 700)
    for max_tile_rows in (None, 512):
        enc = TimeFeatureEncoding(128, embed_type="fixed", freq="m",
                                  max_tile_rows=max_tile_rows)
        out = jax.block_until_ready(enc(x_big))
        ref = enc.reference(x_big)
        if out.shape != (3, 700, 128) or not bool(
            jnp.allclose(out, ref, atol=1e-5, rtol=1e-5)
        ):
            ok = False

    if ok:
        print("KERNEL_OK")
</pallas_src>

<mosaic_0001>
module attributes {stable_mosaic.version = 11 : i64} {
  func.func @kernel(%arg0: i32, %arg1: memref<16x4xi32, #tpu.memory_space<vmem>>, %arg2: memref<74x128xf32, #tpu.memory_space<vmem>>, %arg3: memref<16x128xf32, #tpu.memory_space<vmem>>) attributes {dimension_semantics = [#tpu.dimension_semantics<parallel>], iteration_bounds = array<i64: 1>, scalar_prefetch = 0 : i64, scratch_operands = 0 : i64, tpu.core_type = #tpu.core_type<tc>, window_params = [{transform_indices = @transform_0, window_bounds = array<i64: 16, 4>}, {pipeline_mode = #tpu.pipeline_mode<synchronous>, transform_indices = @transform_1, window_bounds = array<i64: 74, 128>}, {transform_indices = @transform_2, window_bounds = array<i64: 16, 128>}]} {
    %c0 = arith.constant 0 : index
    %c0_0 = arith.constant 0 : index
    %0 = vector.load %arg1[%c0, %c0_0] : memref<16x4xi32, #tpu.memory_space<vmem>>, vector<16x4xi32>
    %1 = tpu.iota {dimensions = array<i32: 1>} : vector<16x74xi32>
    %2 = vector.extract_strided_slice %0 {offsets = [0, 0], sizes = [16, 1], strides = [1, 1]} : vector<16x4xi32> to vector<16x1xi32>
    %3 = vector.broadcast %2 : vector<16x1xi32> to vector<16x74xi32>
    %4 = arith.cmpi eq, %3, %1 : vector<16x74xi32>
    %5 = arith.extui %4 : vector<16x74xi1> to vector<16x74xi32>
    %6 = arith.sitofp %5 : vector<16x74xi32> to vector<16x74xf32>
    %7 = vector.extract_strided_slice %0 {offsets = [0, 1], sizes = [16, 1], strides = [1, 1]} : vector<16x4xi32> to vector<16x1xi32>
    %8 = vector.broadcast %7 : vector<16x1xi32> to vector<16x74xi32>
    %9 = arith.cmpi eq, %8, %1 : vector<16x74xi32>
    %10 = arith.extui %9 : vector<16x74xi1> to vector<16x74xi32>
    %11 = arith.sitofp %10 : vector<16x74xi32> to vector<16x74xf32>
    %12 = arith.addf %6, %11 : vector<16x74xf32>
    %13 = vector.extract_strided_slice %0 {offsets = [0, 2], sizes = [16, 1], strides = [1, 1]} : vector<16x4xi32> to vector<16x1xi32>
    %14 = vector.broadcast %13 : vector<16x1xi32> to vector<16x74xi32>
    %15 = arith.cmpi eq, %14, %1 : vector<16x74xi32>
    %16 = arith.extui %15 : vector<16x74xi1> to vector<16x74xi32>
    %17 = arith.sitofp %16 : vector<16x74xi32> to vector<16x74xf32>
    %18 = arith.addf %12, %17 : vector<16x74xf32>
    %19 = vector.extract_strided_slice %0 {offsets = [0, 3], sizes = [16, 1], strides = [1, 1]} : vector<16x4xi32> to vector<16x1xi32>
    %20 = vector.broadcast %19 : vector<16x1xi32> to vector<16x74xi32>
    %21 = arith.cmpi eq, %20, %1 : vector<16x74xi32>
    %22 = arith.extui %21 : vector<16x74xi1> to vector<16x74xi32>
    %23 = arith.sitofp %22 : vector<16x74xi32> to vector<16x74xf32>
    %24 = arith.addf %18, %23 : vector<16x74xf32>
    %c0_1 = arith.constant 0 : index
    %c0_2 = arith.constant 0 : index
    %25 = vector.load %arg2[%c0_1, %c0_2] : memref<74x128xf32, #tpu.memory_space<vmem>>, vector<74x128xf32>
    %cst = arith.constant dense<0.000000e+00> : vector<16x128xf32>
    %26 = tpu.matmul %24, %25, %cst {dimension_numbers = #tpu.dot_dimension_numbers<[1], [0], [0], [1], [0, 0, 1, 1], [], []>} : vector<16x74xf32>, vector<74x128xf32>, vector<16x128xf32> -> vector<16x128xf32>
    %c0_3 = arith.constant 0 : index
    %c0_4 = arith.constant 0 : index
    %27 = vector.load %arg3[%c0_3, %c0_4] : memref<16x128xf32, #tpu.memory_space<vmem>>, vector<16x128xf32>
    tpu.vector_store %arg3[%c0_3, %c0_4], %26 {strides = array<i32>} : memref<16x128xf32, #tpu.memory_space<vmem>>, vector<16x128xf32>,
    return
  }
  func.func @transform_0(%arg0: i32) -> (i32, i32) {
    %c0_i32 = arith.constant 0 : i32
    %c0_i32_0 = arith.constant 0 : i32
    return %arg0, %c0_i32 : i32, i32
  }
  func.func @transform_1(%arg0: i32) -> (i32, i32) {
    %c0_i32 = arith.constant 0 : i32
    %c0_i32_0 = arith.constant 0 : i32
    %c0_i32_1 = arith.constant 0 : i32
    return %c0_i32, %c0_i32_0 : i32, i32
  }
  func.func @transform_2(%arg0: i32) -> (i32, i32) {
    %c0_i32 = arith.constant 0 : i32
    %c0_i32_0 = arith.constant 0 : i32
    return %arg0, %c0_i32 : i32, i32
  }
}

</mosaic_0001>

<llo_original>
// kernel: tpu_custom_call.1
$region0: #{tpu_custom_call.1}
  #allocation0 [shape = 'u32[]', space=smem, size = 0x4, offset = 0x4, fixed_abs, tag = 'smem constant byte address 0x4 - core index']
  #allocation1 [shape = 'u32[144,128]{1,0:T(1,128)}', space=vmem, size = 0x12000, scoped, tag = 'internal scratch']
  %s0 = inlined_call_operand.vmem [shape: s32[16,4], index: 0, kind: input, shape index: {}]
  %s1 = inlined_call_operand.hbm [shape: f32[74,128], index: 1, kind: input, shape index: {}]
  %s2 = inlined_call_operand.hbm [shape: f32[16,128], index: 2, kind: output, shape index: {}]
  %s3 = sld [smem:[#allocation0]]
  $region22: #{tpu_custom_call.1} parent=0
    _
  %s5 = ssub.s32 1, %s3
  %s6 = scalar_select 0, %s5, %s3
  $region1: #{tpu_custom_call.1} parent=0
    #allocation2 [shape = 'u8[40960]{0}', space=vmem, size = 0xa000, scoped, tag = 'input window, operand 1, single buffered']
    #allocation3 [shape = 's32[1]{0}', space=sflag, size = 0x4, scoped, tag = 'scoped memory for tpu_custom_call.1']
    #allocation4 [shape = 's32[1]{0}', space=sflag, size = 0x4, scoped, tag = 'scoped memory for tpu_custom_call.1']
    #allocation5 [shape = 'u8[8192]{0}', space=vmem, size = 0x2000, scoped, tag = 'output window, operand 0, single buffered']
    %7 = vsyncpa [#allocation3], 0
    %8 = vsyncpa [#allocation4], 0
    // Predicated region
    $region2: #{tpu_custom_call.1} parent=1 // pred_check
      _
    $region3: #{tpu_custom_call.1} parent=1 // pred_check_branch
      %10 = sbr.rel (0) target = $region5
    $region4: #{tpu_custom_call.1} parent=1 // pred_region
      _
    $region5: #{tpu_custom_call.1} parent=1 // pred_fallthru
      _
    // Predicated region
    $region6: #{tpu_custom_call.1} parent=1 // pred_check
      _
    $region7: #{tpu_custom_call.1} parent=1 // pred_check_branch
      %12 = sbr.rel (0) target = $region9
    $region8: #{tpu_custom_call.1} parent=1 // pred_region
      %s14 = ssub.s32 1280, 1280
      %15 = vsyncadd [#allocation3], %s14
      %s16 = sshll.u32 [#allocation2], 4
      %s17 = int_to_ptr.vmem [resolvable:$true] %s16
      %22 = dma.hbm_to_vmem [thread:$0]  %s1, 1280, %s17, [#allocation3], 128, 128, 8
    $region9: #{tpu_custom_call.1} parent=1 // pred_fallthru
      _
    // Predicated region
    $region10: #{tpu_custom_call.1} parent=1 // pred_check
      _
    $region11: #{tpu_custom_call.1} parent=1 // pred_check_branch
      %24 = sbr.rel (0) target = $region13
    $region12: #{tpu_custom_call.1} parent=1 // pred_region
      %25 = dma.done [#allocation3], 1280
    $region13: #{tpu_custom_call.1} parent=1 // pred_fallthru
      _
    %v26 = vld [vmem:[%s0] sm:$0xff]
    %v27 = vld [vmem:[%s0 + $0x8] sm:$0xff]
    %v28 = vlaneseq
    %v29 = vand.u32 %v28, 127
    %30 = vset.pattern.permute.xlu0 0
    %31 = vperm.xlu0 %30, %v26
    %v32 = vpop.permute.xlu0 %31
    %33 = vset.pattern.permute.xlu0 0
    %34 = vperm.xlu0 %33, %v27
    %v35 = vpop.permute.xlu0 %34
    %vm36 = vcmp.eq.s32.totalorder %v32, %v29
    %vm37 = vcmp.eq.s32.totalorder %v35, %v29
    %v38 = vsel %vm36, 1, 0
    %v39 = vsel %vm37, 1, 0
    %v40 = vcvt.s32.f32 %v38
    %v41 = vcvt.s32.f32 %v39
    %42 = vset.pattern.permute.xlu0 1
    %43 = vperm.xlu0 %42, %v26
    %v44 = vpop.permute.xlu0 %43
    %45 = vset.pattern.permute.xlu0 1
    %46 = vperm.xlu0 %45, %v27
    %v47 = vpop.permute.xlu0 %46
    %vm48 = vcmp.eq.s32.totalorder %v44, %v29
    %vm49 = vcmp.eq.s32.totalorder %v47, %v29
    %v50 = vsel %vm48, 1, 0
    %v51 = vsel %vm49, 1, 0
    %v52 = vcvt.s32.f32 %v50
    %v53 = vcvt.s32.f32 %v51
    %v54 = vadd.f32 %v40, %v52
    %v55 = vadd.f32 %v41, %v53
    %56 = vset.pattern.permute.xlu0 2
    %57 = vperm.xlu0 %56, %v26
    %v58 = vpop.permute.xlu0 %57
    %59 = vset.pattern.permute.xlu0 2
    %60 = vperm.xlu0 %59, %v27
    %v61 = vpop.permute.xlu0 %60
    %vm62 = vcmp.eq.s32.totalorder %v58, %v29
    %vm63 = vcmp.eq.s32.totalorder %v61, %v29
    %v64 = vsel %vm62, 1, 0
    %v65 = vsel %vm63, 1, 0
    %v66 = vcvt.s32.f32 %v64
    %v67 = vcvt.s32.f32 %v65
    %v68 = vadd.f32 %v54, %v66
    %v69 = vadd.f32 %v55, %v67
    %70 = vset.pattern.permute.xlu0 3
    %71 = vperm.xlu0 %70, %v26
    %v72 = vpop.permute.xlu0 %71
    %73 = vset.pattern.permute.xlu0 3
    %74 = vperm.xlu0 %73, %v27
    %v75 = vpop.permute.xlu0 %74
    %vm76 = vcmp.eq.s32.totalorder %v72, %v29
    %vm77 = vcmp.eq.s32.totalorder %v75, %v29
    %v78 = vsel %vm76, 1, 0
    %v79 = vsel %vm77, 1, 0
    %v80 = vcvt.s32.f32 %v78
    %v81 = vcvt.s32.f32 %v79
    %v82 = vadd.f32 %v68, %v80
    %v83 = vadd.f32 %v69, %v81
    %v84 = vld [vmem:[#allocation2] sm:$0xff]
    %v85 = vld [vmem:[#allocation2 + $0x8] sm:$0xff]
    %v86 = vld [vmem:[#allocation2 + $0x10] sm:$0xff]
    %v87 = vld [vmem:[#allocation2 + $0x18] sm:$0xff]
    %v88 = vld [vmem:[#allocation2 + $0x20] sm:$0xff]
    %v89 = vld [vmem:[#allocation2 + $0x28] sm:$0xff]
    %v90 = vld [vmem:[#allocation2 + $0x30] sm:$0xff]
    %v91 = vld [vmem:[#allocation2 + $0x38] sm:$0xff]
    %v92 = vld [vmem:[#allocation2 + $0x40] sm:$0xff]
    %v93 = vld [vmem:[#allocation2 + $0x48] sm:$0x3]
    %vm94 = vcmask 605184
    %v96 = vsel %vm94, %v82, 0
    %v99 = vsel %vm94, %v83, 0
    %vm101 = vcmask 1041408
    %v103 = vsel %vm101, %v93, 0
    %105 = vmatprep.subr.mxu0 0.0
    %106 = vmatpush1.msra.mxu0 %v84
    %107 = vmatprep.subr.mxu0 0.0
    %108 = vmatpush1.msra.mxu0 %v85
    %109 = vmatprep.subr.mxu0 0.0
    %110 = vmatpush1.msra.mxu0 %v86
    %111 = vmatprep.subr.mxu0 0.0
    %112 = vmatpush1.msra.mxu0 %v87
    %113 = vmatprep.subr.mxu0 0.0
    %114 = vmatpush1.msra.mxu0 %v88
    %115 = vmatprep.subr.mxu0 0.0
    %116 = vmatpush1.msra.mxu0 %v89
    %117 = vmatprep.subr.mxu0 0.0
    %118 = vmatpush1.msra.mxu0 %v90
    %119 = vmatprep.subr.mxu0 0.0
    %120 = vmatpush1.msra.mxu0 %v91
    %121 = vmatprep.subr.mxu0 0.0
    %122 = vmatpush1.msra.mxu0 %v92
    %123 = vmatprep.subr.mxu0 0.0
    %124 = vmatpush1.msra.mxu0 %v103
    %125 = vmatprep.subr.mxu0 0.0
    %126 = vmatpush1.msra.mxu0 0.0
    %127 = vmatprep.subr.mxu0 0.0
    %128 = vmatpush1.msra.mxu0 0.0
    %129 = vmatprep.subr.mxu0 0.0
    %130 = vmatpush1.msra.mxu0 0.0
    %131 = vmatprep.subr.mxu0 0.0
    %132 = vmatpush1.msra.mxu0 0.0
    %133 = vmatprep.subr.mxu0 0.0
    %134 = vmatpush1.msra.mxu0 0.0
    %135 = vmatprep.subr.mxu0 0.0
    %136 = vmatpush1.msra.mxu0 0.0
    %137 = vmatprep.subr.mxu0 0.0
    %138 = vmatpush1.msra.mxu0 0.0
    %139 = vmatprep.subr.mxu0 0.0
    %140 = vmatpush1.msra.mxu0 0.0
    %141 = vmatprep.subr.mxu0 0.0
    %142 = vmatpush1.msra.mxu0 0.0
    %143 = vmatprep.subr.mxu0 0.0
    %144 = vmatpush1.msra.mxu0 0.0
    %145 = vmatprep.subr.mxu0 0.0
    %146 = vmatpush1.msra.mxu0 0.0
    %147 = vmatprep.subr.mxu0 0.0
    %148 = vmatpush1.msra.mxu0 0.0
    %149 = vmatprep.subr.mxu0 0.0
    %150 = vmatpush1.msra.mxu0 0.0
    %151 = vmatprep.subr.mxu0 0.0
    %152 = vmatpush1.msra.mxu0 0.0
    %153 = vmatprep.subr.mxu0 0.0
    %154 = vmatpush1.msra.mxu0 0.0
    %155 = vmatprep.subr.mxu0 0.0
    %156 = vmatpush1.msra.mxu0 0.0
    %157 = vmatprep.subr.mxu0 0.0
    %158 = vmatpush1.msra.mxu0 0.0
    %159 = vmatprep.subr.mxu0 0.0
    %160 = vmatpush1.msra.mxu0 0.0
    %161 = vmatprep.subr.mxu0 0.0
    %162 = vmatpush1.msra.mxu0 0.0
    %163 = vmatprep.subr.mxu0 0.0
    %164 = vmatpush1.msra.mxu0 0.0
    %165 = vmatprep.subr.mxu0 0.0
    %166 = vmatpush1.msra.mxu0 0.0
    %167 = vmatprep.subr.mxu0 0.0
    %168 = vmatpush1.msra.mxu0 0.0
    %169 = vmatprep.mubr.f32.mxu0 0.0
    %170 = vmatmul.mubr.f32.gmra.mrb[0].mxu0 %v96
    %v171 = vpop.f32.mrb[0].mxu0
    %v172 = vadd.f32 0.0, %v171
    %v173 = vpop.f32.mrb[0].mxu0
    %174 = vmatprep.mubr.f32.mxu0 0.0
    %175 = vmatmul.mubr.f32.gmra.mrb[0].mxu0 %v99
    %v176 = vpop.f32.mrb[0].mxu0
    %v177 = vadd.f32 0.0, %v176
    %v178 = vpop.f32.mrb[0].mxu0
    %179 = vdwg.mxu0
    %180 = vst [vmem:[#allocation5] sm:$0xff] %v172
    %181 = vst [vmem:[#allocation5 + $0x8] sm:$0xff] %v177
    // Predicated region
    $region14: #{tpu_custom_call.1} parent=1 // pred_check
      _
    $region15: #{tpu_custom_call.1} parent=1 // pred_check_branch
      %183 = sbr.rel (0) target = $region17
    $region16: #{tpu_custom_call.1} parent=1 // pred_region
      %s185 = ssub.s32 256, 256
      %186 = vsyncadd [#allocation4], %s185
      %s187 = sshll.u32 [#allocation5], 4
      %s188 = int_to_ptr.vmem [resolvable:$true] %s187
      %193 = dma.vmem_to_hbm [thread:$0]  %s188, 256, %s2, [#allocation4], 128, 128, 8
    $region17: #{tpu_custom_call.1} parent=1 // pred_fallthru
      _
    // Predicated region
    $region18: #{tpu_custom_call.1} parent=1 // pred_check
      _
    $region19: #{tpu_custom_call.1} parent=1 // pred_check_branch
      %195 = sbr.rel (0) target = $region21
    $region20: #{tpu_custom_call.1} parent=1 // pred_region
      %196 = dma.done [#allocation4], 256
    $region21: #{tpu_custom_call.1} parent=1 // pred_fallthru
      _
    %197 = vsyncpa [#allocation3], 1
    %198 = vsyncpa [#allocation4], 1

</llo_original>
